<compile_context>
chip_gen: v5e
topology: v5e:2x2
jax: 0.10.0
libtpu: 0.0.40
codegen_flags: <defaults>
</compile_context>

<pallas_src>
import functools

import jax
import jax.numpy as jnp
from jax.experimental import pallas as pl
from jax.experimental.pallas import tpu as pltpu


def _pos_emb_kernel(w_ref, o_ref):
    # w_ref: (1, TC)  one lane-dense slice of the flattened table (resident
    #                 across the inner batch-axis grid steps)
    # o_ref: (BT, TC) BT batch rows of the output for this grid step
    # Sublane broadcast of the single table row over BT output rows; the VPU
    # fill is fully hidden behind the HBM output writeback for this kernel.
    o_ref[...] = jnp.broadcast_to(w_ref[...], o_ref.shape)


@functools.lru_cache(maxsize=None)
def _chip_profile():
    """Best-effort per-generation parameters.

    Returns (vmem_limit_bytes, block_budget_bytes, multi_tc).
    """
    vmem_capacity = None
    try:
        vmem_capacity = int(getattr(pltpu.get_tpu_info(), "vmem_capacity_bytes"))
    except Exception:
        vmem_capacity = None
    if not vmem_capacity or vmem_capacity <= 0:
        vmem_capacity = 64 * 1024 * 1024  # conservative (v7x-sized) fallback

    kind = ""
    try:
        kind = jax.devices()[0].device_kind.lower()
    except Exception:
        pass

    # v7x is the only current generation with <=64 MiB VMEM per TensorCore and
    # the only one with 2 TensorCores per chip.
    multi_tc = ("v7" in kind) or ("7x" in kind) or (vmem_capacity <= 64 * 1024 * 1024)

    # Never scope more than half of physical VMEM; blocks use 3/4 of the scope
    # so internal scratch keeps headroom.
    vmem_limit = min(vmem_capacity // 2, 64 * 1024 * 1024)
    block_budget = (vmem_limit * 3) // 4
    return vmem_limit, block_budget, multi_tc


def _batch_tiles(batch):
    # Legal sublane tiles: divide `batch` and are either the full batch or a
    # multiple of 8 (sublane granule), so the (8, 128) block rule is satisfied.
    return sorted(
        {d for d in range(1, batch + 1)
         if batch % d == 0 and (d == batch or d % 8 == 0)},
        reverse=True)


def _col_tiles(row):
    # Legal lane tiles: the full row, or divisors that are multiples of 128.
    tiles = {row}
    if row % 128 == 0:
        tiles.update(c for c in range(128, row, 128) if row % c == 0)
    return sorted(tiles, reverse=True)


def positional_embedding(x, pe_weight, *, min_pallas_bytes=1 << 20):
    """x: any array whose leading dim is the batch size (only its shape is used).
    pe_weight: (max_len, d_model) embedding table.
    Returns (batch, max_len, d_model): pe_weight broadcast over the batch axis."""
    batch = x.shape[0]
    max_len, d_model = pe_weight.shape
    row = max_len * d_model
    itemsize = jnp.dtype(pe_weight.dtype).itemsize
    out_shape3 = (batch, max_len, d_model)

    def xla_broadcast():
        return jnp.broadcast_to(pe_weight[None, :, :], out_shape3)

    # Small-shape fast path: for tiny outputs the pallas_call launch/pipeline
    # setup dominates; a plain XLA broadcast is strictly faster.
    if batch * row * itemsize < min_pallas_bytes:
        return xla_broadcast()

    vmem_limit, block_budget, multi_tc = _chip_profile()

    batch_tiles = _batch_tiles(batch)
    col_tiles = _col_tiles(row)

    def _fits(bt, tc):
        # Double-buffered output block + double-buffered (1, tc) table slice.
        return 2 * (bt + 1) * tc * itemsize <= block_budget

    # Graceful handling of row % 128 != 0: if the untiled-row fallback cannot
    # fit the VMEM budget, pad the flattened row up to a multiple of 128 (pad
    # lanes are sliced off after the call).
    pad = 0
    if row % 128 != 0 and not _fits(batch_tiles[-1], col_tiles[-1]):
        pad = (-row) % 128
        col_tiles = _col_tiles(row + pad)
    row_p = row + pad

    # Pick the largest (BT, TC) output block whose buffers fit the budget.
    best = None
    for tc in col_tiles:                 # descending
        for bt in batch_tiles:           # descending
            if _fits(bt, tc):
                if best is None or bt * tc > best[0] * best[1]:
                    best = (bt, tc)
                break                    # first fit is the largest bt for this tc
    if best is None:
        # Pathological shapes (e.g. huge batch with no sublane-aligned divisor):
        # stay correct via XLA rather than over-allocating VMEM.
        return xla_broadcast()
    bt, tc = best

    # v7x megacore: both TensorCores only contribute if there are >= 2 grid
    # steps along a "parallel" axis; split a tile if the whole output would be
    # a single block. Single-TC chips (v5e/v6e) skip this (pure overhead).
    if multi_tc and (row_p // tc) * (batch // bt) < 2:
        smaller_bt = [d for d in batch_tiles if d < bt]
        smaller_tc = [c for c in col_tiles if c < tc]
        if smaller_bt:
            bt = smaller_bt[0]
        elif smaller_tc:
            tc = smaller_tc[0]

    # Lane-dense 2-D view at the pallas_call boundary (row-major reshape: free).
    w2d = pe_weight.reshape(1, row)
    if pad:
        w2d = jnp.pad(w2d, ((0, 0), (0, pad)))

    grid = (row_p // tc, batch // bt)    # columns OUTER, batch INNER

    grid_spec = pltpu.PrefetchScalarGridSpec(
        num_scalar_prefetch=0,
        grid=grid,
        in_specs=[
            # Block index depends only on the OUTER (column) axis, so each
            # table slice is DMA'd once and stays resident in VMEM while the
            # inner batch axis iterates.
            pl.BlockSpec((1, tc), lambda c, b: (0, c)),
        ],
        out_specs=pl.BlockSpec((bt, tc), lambda c, b: (b, c)),
    )

    out2d = pl.pallas_call(
        _pos_emb_kernel,
        out_shape=jax.ShapeDtypeStruct((batch, row_p), pe_weight.dtype),
        grid_spec=grid_spec,
        compiler_params=pltpu.CompilerParams(
            dimension_semantics=("parallel", "parallel"),
            vmem_limit_bytes=vmem_limit),
    )(w2d)

    if pad:
        out2d = out2d[:, :row]
    return out2d.reshape(out_shape3)


if __name__ == "__main__":
    key = jax.random.PRNGKey(0)
    k_w, k_x = jax.random.split(key)

    batch = 2
    max_len = 8     # sequence-length capacity of the positional table
    d_model = 32    # hidden size

    # nn.Embedding default init: N(0, 1), shape (max_len, d_model), float32.
    pe_weight = jax.random.normal(k_w, (max_len, d_model), dtype=jnp.float32)

    # Forward only uses x.size(0); make x a plausible (batch, seq) token tensor.
    x = jax.random.randint(k_x, (batch, max_len), 0, max_len, dtype=jnp.int32)

    ref = jnp.broadcast_to(pe_weight[None, :, :], (batch, max_len, d_model))

    # Force the Pallas path (the default wrapper short-circuits shapes this
    # small to a plain XLA broadcast).
    out = positional_embedding(x, pe_weight, min_pallas_bytes=0)
    out = jax.block_until_ready(out)
    assert out.shape == (batch, max_len, d_model)
    assert out.dtype == jnp.float32
    assert bool(jnp.array_equal(out, ref))

    # Default wrapper (small-shape fast path) must match as well.
    out_default = jax.block_until_ready(positional_embedding(x, pe_weight))
    assert bool(jnp.array_equal(out_default, ref))

    print("KERNEL_OK")
</pallas_src>

<mosaic_0001>
module attributes {stable_mosaic.version = 11 : i64} {
  func.func @_pos_emb_kernel(%arg0: i32, %arg1: i32, %arg2: memref<1x128xf32, #tpu.memory_space<vmem>>, %arg3: memref<2x128xf32, #tpu.memory_space<vmem>>) attributes {dimension_semantics = [#tpu.dimension_semantics<parallel>, #tpu.dimension_semantics<parallel>], iteration_bounds = array<i64: 2, 1>, scalar_prefetch = 0 : i64, scratch_operands = 0 : i64, tpu.core_type = #tpu.core_type<tc>, window_params = [{transform_indices = @transform_0, window_bounds = array<i64: 1, 128>}, {transform_indices = @transform_1, window_bounds = array<i64: 2, 128>}]} {
    %c0 = arith.constant 0 : index
    %c0_0 = arith.constant 0 : index
    %0 = vector.load %arg2[%c0, %c0_0] : memref<1x128xf32, #tpu.memory_space<vmem>>, vector<1x128xf32>
    %1 = vector.shape_cast %0 : vector<1x128xf32> to vector<1x128xf32>
    %2 = vector.broadcast %1 : vector<1x128xf32> to vector<2x128xf32>
    %c0_1 = arith.constant 0 : index
    %c0_2 = arith.constant 0 : index
    %3 = vector.load %arg3[%c0_1, %c0_2] : memref<2x128xf32, #tpu.memory_space<vmem>>, vector<2x128xf32>
    tpu.vector_store %arg3[%c0_1, %c0_2], %2 {strides = array<i32>} : memref<2x128xf32, #tpu.memory_space<vmem>>, vector<2x128xf32>,
    return
  }
  func.func @transform_0(%arg0: i32, %arg1: i32) -> (i32, i32) {
    %c0_i32 = arith.constant 0 : i32
    %c0_i32_0 = arith.constant 0 : i32
    return %c0_i32, %arg0 : i32, i32
  }
  func.func @transform_1(%arg0: i32, %arg1: i32) -> (i32, i32) {
    %c0_i32 = arith.constant 0 : i32
    return %arg1, %arg0 : i32, i32
  }
}

</mosaic_0001>

<llo_original>
// kernel: tpu_custom_call.1
$region0: #{tpu_custom_call.1}
  #allocation0 [shape = 'u32[]', space=smem, size = 0x4, offset = 0x4, fixed_abs, tag = 'smem constant byte address 0x4 - core index']
  #allocation1 [shape = 'u32[72,128]{1,0:T(1,128)}', space=vmem, size = 0x9000, scoped, tag = 'internal scratch']
  %s0 = inlined_call_operand.hbm [shape: f32[1,256], index: 0, kind: input, shape index: {}]
  %s1 = inlined_call_operand.hbm [shape: f32[2,256], index: 1, kind: output, shape index: {}]
  %s2 = sld [smem:[#allocation0]]
  $region41: #{tpu_custom_call.1} parent=0
    _
  %s4 = ssub.s32 1, %s2
  %s5 = scalar_select 0, %s4, %s2
  $region1: #{tpu_custom_call.1} parent=0
    #allocation2 [shape = 'u8[1024]{0}', space=vmem, size = 0x400, scoped, tag = 'input window, operand 0']
    #allocation3 [shape = 's32[2]{0}', space=sflag, size = 0x8, scoped, tag = 'scoped memory for tpu_custom_call.1']
    #allocation4 [shape = 's32[2]{0}', space=sflag, size = 0x8, scoped, tag = 'scoped memory for tpu_custom_call.1']
    #allocation5 [shape = 'u8[2048]{0}', space=vmem, size = 0x800, scoped, tag = 'output window, operand 0']
    %6 = vsyncpa [#allocation3], 0
    %s7 = scalar_lea.sflag [#allocation3], 1
    %8 = vsyncpa %s7, 0
    %9 = vsyncpa [#allocation4], 0
    %s10 = scalar_lea.sflag [#allocation4], 1
    %11 = vsyncpa %s10, 0
    loop: start=0, step=1, limit=4
    $region2: #{tpu_custom_call.1} parent=1 // loop_pre_header
      _
    $region3: #{tpu_custom_call.1} parent=1 // loop_header
      %s13 = sphi 0, %s17
      %p14 = scmp.ge.s32.totalorder %s13, 4
      %s20 = sphi 0, %s32
      %s21 = sphi 0, %s28
      %s22 = sphi 0, %s20
      %s23 = sphi 0, %s21
      %s24 = sphi 0, %s22
      %s25 = sphi 0, %s23
      %s35 = sphi 0, %s37
      %s38 = sphi 0, %s35
      %s39 = sphi 0, %s38
      %s55 = sphi 0, %s39
      %s63 = sphi 0, %s65
      %s66 = sphi 0, %s63
      %s67 = sphi 0, %s66
      %s83 = sphi 0, %s67
    $region4: #{tpu_custom_call.1} parent=1 // loop_header_branch
      %16 = sbr.rel (%p14) target = $region8
    $region5: #{tpu_custom_call.1} parent=1 // loop_body
      %s18 = ssub.s32 %s13, 1
      %s19 = ssub.s32 %s13, 2
      %s26 = sadd.s32 1, %s21
      %p27 = scmp.ge.s32.totalorder %s26, 1
      %s28 = scalar_select %p27, 0, %s26
      %s29 = sadd.s32 1, %s20
      %s30 = scalar_select %p27, %s29, %s20
      %p31 = scmp.ge.s32.totalorder %s30, 2
      %s32 = scalar_select %p31, 0, %s30
      %s33 = ssub.s32 %s20, %s32
      %p34 = scmp.eq.s32.totalorder %s33, 0
      %s36 = sadd.s32 %s35, 1
      %s37 = scalar_select %p34, %s35, %s36
      %p40 = pneg %p34
      %p41 = scmp.eq.s32.totalorder %s13, 1
      %p42 = por %p40, %p41
      %p43 = scmp.ne.s32.totalorder %s35, %s38
      %p44 = scmp.eq.s32.totalorder %s13, 0
      %p45 = por %p43, %p44
      %p46 = scmp.ne.s32.totalorder %s35, %s38
      %p47 = scmp.eq.s32.totalorder %s18, 1
      %p48 = por %p46, %p47
      %p49 = scmp.ne.s32.totalorder %s38, %s39
      %p50 = scmp.eq.s32.totalorder %s18, 0
      %p51 = por %p49, %p50
      %p52 = scmp.ne.s32.totalorder %s38, %s39
      %p53 = scmp.eq.s32.totalorder %s19, 1
      %p54 = por %p52, %p53
      %p56 = scmp.ne.s32.totalorder %s39, %s55
      %p57 = scmp.eq.s32.totalorder %s19, 0
      %p58 = por %p56, %p57
      %s59 = ssub.s32 %s21, %s28
      %s60 = ssub.s32 %s20, %s32
      %s61 = sor.u32 %s59, %s60
      %p62 = scmp.eq.s32.totalorder %s61, 0
      %s64 = sadd.s32 %s63, 1
      %s65 = scalar_select %p62, %s63, %s64
      %p68 = pneg %p62
      %p69 = scmp.eq.s32.totalorder %s13, 1
      %p70 = por %p68, %p69
      %p71 = scmp.ne.s32.totalorder %s63, %s66
      %p72 = scmp.eq.s32.totalorder %s13, 0
      %p73 = por %p71, %p72
      %p74 = scmp.ne.s32.totalorder %s63, %s66
      %p75 = scmp.eq.s32.totalorder %s18, 1
      %p76 = por %p74, %p75
      %p77 = scmp.ne.s32.totalorder %s66, %s67
      %p78 = scmp.eq.s32.totalorder %s18, 0
      %p79 = por %p77, %p78
      %p80 = scmp.ne.s32.totalorder %s66, %s67
      %p81 = scmp.eq.s32.totalorder %s19, 1
      %p82 = por %p80, %p81
      %p84 = scmp.ne.s32.totalorder %s67, %s83
      %p85 = scmp.eq.s32.totalorder %s19, 0
      %p86 = por %p84, %p85
      %p87 = scmp.le.s32.totalorder 1, %s13
      %p88 = scmp.lt.s32.totalorder %s13, 3
      %p89 = pnand %p87, %p88
      %p90 = pneg %p89
      // Predicated region
      $region9: #{tpu_custom_call.1} parent=5 // pred_check
        _
      $region10: #{tpu_custom_call.1} parent=5 // pred_check_branch
        %92 = sbr.rel (%p89) target = $region12
      $region11: #{tpu_custom_call.1} parent=5 // pred_region
        %s93 = ssub.s32 %s13, 1
      $region12: #{tpu_custom_call.1} parent=5 // pred_fallthru
        _
      %p94 = scmp.lt.s32.totalorder %s13, 2
      // Predicated region
      $region13: #{tpu_custom_call.1} parent=5 // pred_check
        %p95 = pneg %p94
      $region14: #{tpu_custom_call.1} parent=5 // pred_check_branch
        %97 = sbr.rel (%p95) target = $region16
      $region15: #{tpu_custom_call.1} parent=5 // pred_region
        // Predicated region
        $region17: #{tpu_custom_call.1} parent=15 // pred_check
          %p98 = pneg %p45
        $region18: #{tpu_custom_call.1} parent=15 // pred_check_branch
          %100 = sbr.rel (%p98) target = $region20
        $region19: #{tpu_custom_call.1} parent=15 // pred_region
          %s101 = sand.u32 %s35, 1
          %s102 = scalar_lea.sflag [#allocation3], %s101
          %s103 = sand.u32 %s35, 1
          %s104 = scalar_lea.vmem [#allocation2], %s103
          %106 = vsyncadd %s102, 0
          %s107 = scalar_lea.hbm %s0, %s20
          %s109 = sshll.u32 %s107, 4
          %s110 = int_to_ptr.hbm [resolvable:$true] %s109
          %s111 = sshll.u32 %s104, 4
          %s112 = int_to_ptr.vmem [resolvable:$true] %s111
          %114 = dma.hbm_to_vmem [thread:$0]  %s110, 16, %s112, %s102
        $region20: #{tpu_custom_call.1} parent=15 // pred_fallthru
          _
      $region16: #{tpu_custom_call.1} parent=5 // pred_fallthru
        _
      %p115 = scmp.le.s32.totalorder 1, %s13
      %p116 = scmp.lt.s32.totalorder %s13, 3
      %p117 = pnand %p115, %p116
      %p118 = pneg %p117
      // Predicated region
      $region21: #{tpu_custom_call.1} parent=5 // pred_check
        _
      $region22: #{tpu_custom_call.1} parent=5 // pred_check_branch
        %120 = sbr.rel (%p117) target = $region24
      $region23: #{tpu_custom_call.1} parent=5 // pred_region
        %s121 = ssub.s32 %s13, 1
        %s122 = sand.u32 %s38, 1
        %s123 = scalar_lea.sflag [#allocation3], %s122
        %s124 = sand.u32 %s38, 1
        %s125 = scalar_lea.vmem [#allocation2], %s124
        // Predicated region
        $region25: #{tpu_custom_call.1} parent=23 // pred_check
          %p126 = pneg %p51
        $region26: #{tpu_custom_call.1} parent=23 // pred_check_branch
          %128 = sbr.rel (%p126) target = $region28
        $region27: #{tpu_custom_call.1} parent=23 // pred_region
          %130 = dma.done %s123, 16
        $region28: #{tpu_custom_call.1} parent=23 // pred_fallthru
          _
        %s131 = sand.u32 %s38, 1
        %s132 = scalar_lea.sflag [#allocation3], %s131
        %s133 = sand.u32 %s38, 1
        %s134 = scalar_lea.vmem [#allocation2], %s133
        %p135 = pneg %p51
        %p136 = pneg %p48
        %p137 = pneg %p79
        %p138 = pneg %p76
        %s139 = sand.u32 %s66, 1
        %s140 = scalar_lea.sflag [#allocation4], %s139
        %s141 = sand.u32 %s66, 1
        %s142 = smul.addr %s141, 2
        %s143 = scalar_lea.vmem [#allocation5], %s142
        %v144 = vld [vmem:[%s125] sm:$0x1]
        %v146 = vperm.slane %v144, 0
        %148 = vst [vmem:[%s143] sm:$0x3] %v146
        %s149 = sand.u32 %s66, 1
        %s150 = scalar_lea.sflag [#allocation4], %s149
        %s151 = sand.u32 %s66, 1
        %s152 = smul.addr %s151, 2
        %s153 = scalar_lea.vmem [#allocation5], %s152
        // Predicated region
        $region29: #{tpu_custom_call.1} parent=23 // pred_check
          %p154 = pneg %p76
        $region30: #{tpu_custom_call.1} parent=23 // pred_check_branch
          %156 = sbr.rel (%p154) target = $region32
        $region31: #{tpu_custom_call.1} parent=23 // pred_region
          %158 = vsyncadd %s150, 0
          %s159 = smul.addr %s23, 2
          %s160 = sadd.s32 %s22, %s159
          %s161 = smul.addr %s160, 2
          %s162 = scalar_lea.hbm %s1, %s161
          %s164 = sshll.u32 %s153, 4
          %s165 = int_to_ptr.vmem [resolvable:$true] %s164
          %s166 = sshll.u32 %s162, 4
          %s167 = int_to_ptr.hbm [resolvable:$true] %s166
          %169 = dma.vmem_to_hbm [thread:$0]  %s165, 32, %s167, %s150
        $region32: #{tpu_custom_call.1} parent=23 // pred_fallthru
          _
      $region24: #{tpu_custom_call.1} parent=5 // pred_fallthru
        _
      %p170 = scmp.le.s32.totalorder 2, %s13
      // Predicated region
      $region33: #{tpu_custom_call.1} parent=5 // pred_check
        %p171 = pneg %p170
      $region34: #{tpu_custom_call.1} parent=5 // pred_check_branch
        %173 = sbr.rel (%p171) target = $region36
      $region35: #{tpu_custom_call.1} parent=5 // pred_region
        %s174 = ssub.s32 %s13, 2
        // Predicated region
        $region37: #{tpu_custom_call.1} parent=35 // pred_check
          %p175 = pneg %p82
        $region38: #{tpu_custom_call.1} parent=35 // pred_check_branch
          %177 = sbr.rel (%p175) target = $region40
        $region39: #{tpu_custom_call.1} parent=35 // pred_region
          %s178 = sand.u32 %s67, 1
          %s179 = scalar_lea.sflag [#allocation4], %s178
          %s180 = sand.u32 %s67, 1
          %s181 = smul.addr %s180, 2
          %s182 = scalar_lea.vmem [#allocation5], %s181
          %184 = dma.done %s179, 32
        $region40: #{tpu_custom_call.1} parent=35 // pred_fallthru
          _
      $region36: #{tpu_custom_call.1} parent=5 // pred_fallthru
        _
    $region6: #{tpu_custom_call.1} parent=1 // loop_footer
      %s17 = sadd.s32 1, %s13
    $region7: #{tpu_custom_call.1} parent=1 // loop_footer_branch
      %12 = sbr.rel target = $region3
    $region8: #{tpu_custom_call.1} parent=1 // loop_exit
      _
    %185 = vsyncpa [#allocation3], 1
    %s186 = scalar_lea.sflag [#allocation3], 1
    %187 = vsyncpa %s186, 1
    %188 = vsyncpa [#allocation4], 1
    %s189 = scalar_lea.sflag [#allocation4], 1
    %190 = vsyncpa %s189, 1

</llo_original>
